<compile_context>
chip_gen: v7x
topology: tpu7x:2x2x1
jax: 0.10.0
libtpu: 0.0.40
codegen_flags: <defaults>
</compile_context>

<pallas_src>
import functools

import jax
import jax.numpy as jnp
import numpy as np
from jax.experimental import pallas as pl
from jax.experimental.pallas import tpu as pltpu


_COMPUTE_DTYPE = jnp.bfloat16  # matmul operand dtype (accumulation stays f32)


def _convap_kernel(x_ref, pt_ref, w_ref, b_ref, o_ref):
    """One grid step processes a tile of Bt batch rows.

    x_ref : (Bt, Cin, HW)  bf16  -- NCHW input with spatial flattened (no transpose)
    pt_ref: (HW, S)        bf16  -- adaptive-avg-pool matrix, transposed
    w_ref : (Cout, Cin)    bf16  -- squeezed 1x1 conv weight
    b_ref : (Cout, 1)      f32   -- conv bias
    o_ref : (Bt, Cout, S)  f32   -- channel-major result; row-major flatten of
                                    (Cout, S) == PyTorch flatten(1) of (Cout,s1,s2)
    """
    bt = x_ref.shape[0]
    pt = pt_ref[...]
    w = w_ref[...]
    b = b_ref[...]
    # bt <= 8: fully unrolled, every iteration is an independent batch row.
    for bi in range(bt):
        # Adaptive average pool first (commutes with the 1x1 conv).
        xp = jnp.dot(x_ref[bi], pt, preferred_element_type=jnp.float32)      # (Cin, S)
        # 1x1 conv after pooling; bias added post-pool (each pooling row sums to 1).
        y = jnp.dot(w, xp.astype(w.dtype),
                    preferred_element_type=jnp.float32) + b                  # (Cout, S)
        # F.normalize(x.flatten(1)): L2 norm over all Cout*S elements of this row.
        norm = jnp.sqrt(jnp.sum(y * y))
        y = y * (1.0 / jnp.maximum(norm, jnp.float32(1e-12)))
        o_ref[bi] = y.astype(o_ref.dtype)


def _adaptive_pool_matrix(H, W, s1, s2):
    """(s1*s2, H*W) matrix implementing AdaptiveAvgPool2d((s1, s2)) on flat HW."""
    P = np.zeros((s1 * s2, H * W), dtype=np.float32)
    for i in range(s1):
        h0 = (i * H) // s1
        h1 = -((-(i + 1) * H) // s1)  # ceil((i+1)*H / s1)
        for j in range(s2):
            w0 = (j * W) // s2
            w1 = -((-(j + 1) * W) // s2)
            area = (h1 - h0) * (w1 - w0)
            for h in range(h0, h1):
                for w in range(w0, w1):
                    P[i * s2 + j, h * W + w] = 1.0 / area
    return P


def _round_up(n, m):
    return ((n + m - 1) // m) * m


@functools.partial(jax.jit, static_argnames=("s1", "s2"))
def convap_forward(x_nchw, weight, bias, *, s1=2, s2=2):
    """x_nchw: (B, Cin, H, W); weight: (Cout, Cin) (1x1 conv kernel squeezed);
    bias: (Cout,). Returns (B, Cout*s1*s2), L2-normalized per row."""
    B, Cin, H, W = x_nchw.shape
    Cout = weight.shape[0]
    HW = H * W
    S = s1 * s2

    # NCHW -> (B, Cin, HW) is a free reshape (no HBM transpose); bf16 halves the
    # bytes the (HBM-bound) kernel has to stream for x.
    x = x_nchw.reshape(B, Cin, HW).astype(_COMPUTE_DTYPE)
    w = weight.astype(_COMPUTE_DTYPE)                         # (Cout, Cin)
    b = bias.reshape(Cout, 1).astype(jnp.float32)             # (Cout, 1)
    pt = jnp.asarray(_adaptive_pool_matrix(H, W, s1, s2).T,
                     dtype=_COMPUTE_DTYPE)                    # (HW, S)

    # Batch tile: <=8 rows/step, sized so the double-buffered x block stays
    # within ~24 MiB (fits v7x's 64 MiB VMEM with room for weights + output).
    itm = jnp.dtype(_COMPUTE_DTYPE).itemsize
    x_row_bytes = _round_up(Cin, 16) * _round_up(HW, 128) * itm
    bt = int(max(1, min(B, 8, (24 << 20) // max(1, 2 * x_row_bytes))))

    # Rough padded, double-buffered VMEM estimate -> raise the scoped-VMEM limit
    # (v5e's 16 MiB default is too small for realistic channel counts).
    vmem_est = 2 * (
        bt * _round_up(Cin, 16) * _round_up(HW, 128) * itm        # x block
        + _round_up(Cout, 16) * _round_up(Cin, 128) * itm          # w
        + _round_up(HW, 16) * _round_up(S, 128) * itm              # P^T
        + _round_up(Cout, 8) * 128 * 4                             # bias
        + bt * _round_up(Cout, 8) * _round_up(S, 128) * 4          # out block
    )
    vmem_limit = int(min(max(vmem_est + (8 << 20), 32 << 20), 96 << 20))

    out = pl.pallas_call(
        _convap_kernel,
        out_shape=jax.ShapeDtypeStruct((B, Cout, S), jnp.float32),
        grid_spec=pltpu.PrefetchScalarGridSpec(
            num_scalar_prefetch=0,
            grid=(pl.cdiv(B, bt),),
            in_specs=[
                pl.BlockSpec((bt, Cin, HW), lambda i: (i, 0, 0)),
                pl.BlockSpec((HW, S), lambda i: (0, 0)),      # constant: loaded once
                pl.BlockSpec((Cout, Cin), lambda i: (0, 0)),  # constant: loaded once
                pl.BlockSpec((Cout, 1), lambda i: (0, 0)),    # constant: loaded once
            ],
            out_specs=pl.BlockSpec((bt, Cout, S), lambda i: (i, 0, 0)),
        ),
        compiler_params=pltpu.CompilerParams(
            dimension_semantics=("parallel",),   # v7x megacore shards the batch axis
            vmem_limit_bytes=vmem_limit,
        ),
    )(x, pt, w, b)

    # (B, Cout, S) -> (B, Cout*S): free row-major reshape, identical ordering to
    # PyTorch's flatten(1) of (B, Cout, s1, s2).
    return out.reshape(B, Cout * S)


def convap_reference(x_nchw, weight, bias, *, s1=2, s2=2):
    """Plain-JAX f32 reference mirroring the PyTorch forward, for verification."""
    B, Cin, H, W = x_nchw.shape
    Cout = weight.shape[0]
    # 1x1 conv
    y = jnp.einsum("bchw,oc->bohw", x_nchw, weight) + bias[None, :, None, None]
    # adaptive avg pool via the pooling matrix
    P = jnp.asarray(_adaptive_pool_matrix(H, W, s1, s2))   # (S, HW)
    pooled = jnp.einsum("bcn,sn->bcs", y.reshape(B, Cout, H * W), P)  # (B, Cout, S)
    flat = pooled.reshape(B, Cout * s1 * s2)
    nrm = jnp.maximum(jnp.sqrt(jnp.sum(flat * flat, axis=1, keepdims=True)), 1e-12)
    return flat / nrm


if __name__ == "__main__":
    # Small, deterministic example consistent with the module's forward.
    B, Cin, H, W = 2, 8, 16, 16
    Cout, s1, s2 = 32, 2, 2

    key = jax.random.PRNGKey(0)
    kx, kw, kb = jax.random.split(key, 3)
    x = jax.random.normal(kx, (B, Cin, H, W), dtype=jnp.float32)
    # Deterministic synthetic params (Conv2d 1x1 weight squeezed to (Cout, Cin)).
    weight = jax.random.normal(kw, (Cout, Cin), dtype=jnp.float32) * (1.0 / np.sqrt(Cin))
    bias = jax.random.normal(kb, (Cout,), dtype=jnp.float32) * 0.1

    out = convap_forward(x, weight, bias, s1=s1, s2=s2)
    out = jax.block_until_ready(out)

    ref = convap_reference(x, weight, bias, s1=s1, s2=s2)
    assert out.shape == (B, Cout * s1 * s2)
    # bf16 matmul operands (f32 accumulation) vs an all-f32 reference -> relaxed tol.
    np.testing.assert_allclose(np.asarray(out), np.asarray(ref), rtol=2e-2, atol=2e-2)

    print("KERNEL_OK")
</pallas_src>

<mosaic_0001>
module attributes {stable_mosaic.version = 11 : i64} {
  func.func @_convap_kernel(%arg0: i32, %arg1: memref<2x8x256xbf16, #tpu.memory_space<vmem>>, %arg2: memref<256x4xbf16, #tpu.memory_space<vmem>>, %arg3: memref<32x8xbf16, #tpu.memory_space<vmem>>, %arg4: memref<32x1xf32, #tpu.memory_space<vmem>>, %arg5: memref<2x32x4xf32, #tpu.memory_space<vmem>>) attributes {dimension_semantics = [#tpu.dimension_semantics<parallel>], iteration_bounds = array<i64: 1>, scalar_prefetch = 0 : i64, scratch_operands = 0 : i64, tpu.core_type = #tpu.core_type<tc>, window_params = [{transform_indices = @transform_0, window_bounds = array<i64: 2, 8, 256>}, {pipeline_mode = #tpu.pipeline_mode<synchronous>, transform_indices = @transform_1, window_bounds = array<i64: 256, 4>}, {pipeline_mode = #tpu.pipeline_mode<synchronous>, transform_indices = @transform_2, window_bounds = array<i64: 32, 8>}, {pipeline_mode = #tpu.pipeline_mode<synchronous>, transform_indices = @transform_3, window_bounds = array<i64: 32, 1>}, {transform_indices = @transform_4, window_bounds = array<i64: 2, 32, 4>}]} {
    %c0 = arith.constant 0 : index
    %c0_0 = arith.constant 0 : index
    %0 = vector.load %arg2[%c0, %c0_0] : memref<256x4xbf16, #tpu.memory_space<vmem>>, vector<256x4xbf16>
    %c0_1 = arith.constant 0 : index
    %c0_2 = arith.constant 0 : index
    %1 = vector.load %arg3[%c0_1, %c0_2] : memref<32x8xbf16, #tpu.memory_space<vmem>>, vector<32x8xbf16>
    %c0_3 = arith.constant 0 : index
    %c0_4 = arith.constant 0 : index
    %2 = vector.load %arg4[%c0_3, %c0_4] : memref<32x1xf32, #tpu.memory_space<vmem>>, vector<32x1xf32>
    %c0_5 = arith.constant 0 : index
    %c0_6 = arith.constant 0 : index
    %c0_7 = arith.constant 0 : index
    %3 = vector.load %arg1[%c0_5, %c0_6, %c0_7] : memref<2x8x256xbf16, #tpu.memory_space<vmem>>, vector<1x8x256xbf16>
    %4 = vector.shape_cast %3 : vector<1x8x256xbf16> to vector<8x256xbf16>
    %cst = arith.constant dense<0.000000e+00> : vector<8x4xf32>
    %5 = tpu.matmul %4, %0, %cst {dimension_numbers = #tpu.dot_dimension_numbers<[1], [0], [0], [1], [0, 0, 1, 1], [], []>} : vector<8x256xbf16>, vector<256x4xbf16>, vector<8x4xf32> -> vector<8x4xf32>
    %6 = arith.truncf %5 : vector<8x4xf32> to vector<8x4xbf16>
    %cst_8 = arith.constant dense<0.000000e+00> : vector<32x4xf32>
    %7 = tpu.matmul %1, %6, %cst_8 {dimension_numbers = #tpu.dot_dimension_numbers<[1], [0], [0], [1], [0, 0, 1, 1], [], []>} : vector<32x8xbf16>, vector<8x4xbf16>, vector<32x4xf32> -> vector<32x4xf32>
    %8 = vector.broadcast %2 : vector<32x1xf32> to vector<32x4xf32>
    %9 = arith.addf %7, %8 : vector<32x4xf32>
    %10 = arith.mulf %9, %9 : vector<32x4xf32>
    %11 = vector.shape_cast %10 : vector<32x4xf32> to vector<1x32x4xf32>
    %cst_9 = arith.constant dense<0.000000e+00> : vector<1xf32>
    %12 = vector.multi_reduction <add>, %11, %cst_9 [1, 2] : vector<1x32x4xf32> to vector<1xf32>
    %13 = vector.shape_cast %12 : vector<1xf32> to vector<1x1x1xf32>
    %14 = vector.extract %13[0, 0, 0] : f32 from vector<1x1x1xf32>
    %15 = math.sqrt %14 : f32
    %cst_10 = arith.constant 9.99999996E-13 : f32
    %16 = arith.maximumf %15, %cst_10 : f32
    %cst_11 = arith.constant 1.000000e+00 : f32
    %17 = arith.divf %cst_11, %16 : f32
    %18 = vector.broadcast %17 : f32 to vector<32x4xf32>
    %19 = arith.mulf %9, %18 : vector<32x4xf32>
    %c0_12 = arith.constant 0 : index
    %c0_13 = arith.constant 0 : index
    %c0_14 = arith.constant 0 : index
    %20 = vector.load %arg5[%c0_12, %c0_13, %c0_14] : memref<2x32x4xf32, #tpu.memory_space<vmem>>, vector<1x32x4xf32>
    %21 = vector.shape_cast %20 : vector<1x32x4xf32> to vector<32x4xf32>
    %22 = vector.shape_cast %19 : vector<32x4xf32> to vector<1x32x4xf32>
    tpu.vector_store %arg5[%c0_12, %c0_13, %c0_14], %22 {strides = array<i32>} : memref<2x32x4xf32, #tpu.memory_space<vmem>>, vector<1x32x4xf32>,
    %c1 = arith.constant 1 : index
    %c0_15 = arith.constant 0 : index
    %c0_16 = arith.constant 0 : index
    %23 = vector.load %arg1[%c1, %c0_15, %c0_16] : memref<2x8x256xbf16, #tpu.memory_space<vmem>>, vector<1x8x256xbf16>
    %24 = vector.shape_cast %23 : vector<1x8x256xbf16> to vector<8x256xbf16>
    %cst_17 = arith.constant dense<0.000000e+00> : vector<8x4xf32>
    %25 = tpu.matmul %24, %0, %cst_17 {dimension_numbers = #tpu.dot_dimension_numbers<[1], [0], [0], [1], [0, 0, 1, 1], [], []>} : vector<8x256xbf16>, vector<256x4xbf16>, vector<8x4xf32> -> vector<8x4xf32>
    %26 = arith.truncf %25 : vector<8x4xf32> to vector<8x4xbf16>
    %cst_18 = arith.constant dense<0.000000e+00> : vector<32x4xf32>
    %27 = tpu.matmul %1, %26, %cst_18 {dimension_numbers = #tpu.dot_dimension_numbers<[1], [0], [0], [1], [0, 0, 1, 1], [], []>} : vector<32x8xbf16>, vector<8x4xbf16>, vector<32x4xf32> -> vector<32x4xf32>
    %28 = vector.broadcast %2 : vector<32x1xf32> to vector<32x4xf32>
    %29 = arith.addf %27, %28 : vector<32x4xf32>
    %30 = arith.mulf %29, %29 : vector<32x4xf32>
    %31 = vector.shape_cast %30 : vector<32x4xf32> to vector<1x32x4xf32>
    %cst_19 = arith.constant dense<0.000000e+00> : vector<1xf32>
    %32 = vector.multi_reduction <add>, %31, %cst_19 [1, 2] : vector<1x32x4xf32> to vector<1xf32>
    %33 = vector.shape_cast %32 : vector<1xf32> to vector<1x1x1xf32>
    %34 = vector.extract %33[0, 0, 0] : f32 from vector<1x1x1xf32>
    %35 = math.sqrt %34 : f32
    %cst_20 = arith.constant 9.99999996E-13 : f32
    %36 = arith.maximumf %35, %cst_20 : f32
    %cst_21 = arith.constant 1.000000e+00 : f32
    %37 = arith.divf %cst_21, %36 : f32
    %38 = vector.broadcast %37 : f32 to vector<32x4xf32>
    %39 = arith.mulf %29, %38 : vector<32x4xf32>
    %c1_22 = arith.constant 1 : index
    %c0_23 = arith.constant 0 : index
    %c0_24 = arith.constant 0 : index
    %40 = vector.load %arg5[%c1_22, %c0_23, %c0_24] : memref<2x32x4xf32, #tpu.memory_space<vmem>>, vector<1x32x4xf32>
    %41 = vector.shape_cast %40 : vector<1x32x4xf32> to vector<32x4xf32>
    %42 = vector.shape_cast %39 : vector<32x4xf32> to vector<1x32x4xf32>
    tpu.vector_store %arg5[%c1_22, %c0_23, %c0_24], %42 {strides = array<i32>} : memref<2x32x4xf32, #tpu.memory_space<vmem>>, vector<1x32x4xf32>,
    return
  }
  func.func @transform_0(%arg0: i32) -> (i32, i32, i32) {
    %c0_i32 = arith.constant 0 : i32
    %c0_i32_0 = arith.constant 0 : i32
    %c0_i32_1 = arith.constant 0 : i32
    return %arg0, %c0_i32, %c0_i32_0 : i32, i32, i32
  }
  func.func @transform_1(%arg0: i32) -> (i32, i32) {
    %c0_i32 = arith.constant 0 : i32
    %c0_i32_0 = arith.constant 0 : i32
    %c0_i32_1 = arith.constant 0 : i32
    return %c0_i32, %c0_i32_0 : i32, i32
  }
  func.func @transform_2(%arg0: i32) -> (i32, i32) {
    %c0_i32 = arith.constant 0 : i32
    %c0_i32_0 = arith.constant 0 : i32
    %c0_i32_1 = arith.constant 0 : i32
    return %c0_i32, %c0_i32_0 : i32, i32
  }
  func.func @transform_3(%arg0: i32) -> (i32, i32) {
    %c0_i32 = arith.constant 0 : i32
    %c0_i32_0 = arith.constant 0 : i32
    %c0_i32_1 = arith.constant 0 : i32
    return %c0_i32, %c0_i32_0 : i32, i32
  }
  func.func @transform_4(%arg0: i32) -> (i32, i32, i32) {
    %c0_i32 = arith.constant 0 : i32
    %c0_i32_0 = arith.constant 0 : i32
    %c0_i32_1 = arith.constant 0 : i32
    return %arg0, %c0_i32, %c0_i32_0 : i32, i32, i32
  }
}

</mosaic_0001>

<llo_original>
// kernel: convap_forward.1
$region0: #{convap_forward.1}
  #allocation0 [shape = 'u32[]', space=smem, size = 0x4, offset = 0x4, fixed_abs, tag = 'smem constant byte address 0x4 - core index']
  #allocation1 [shape = 'u32[144,128]{1,0:T(1,128)}', space=vmem, size = 0x12000, scoped, tag = 'internal scratch']
  %s0 = inlined_call_operand.vmem [shape: bf16[2,8,256], index: 0, kind: input, shape index: {}]
  %s1 = inlined_call_operand.vmem [shape: bf16[256,4], index: 1, kind: input, shape index: {}]
  %s2 = inlined_call_operand.vmem [shape: bf16[32,8], index: 2, kind: input, shape index: {}]
  %s3 = inlined_call_operand.vmem [shape: f32[32,1], index: 3, kind: input, shape index: {}]
  %s4 = inlined_call_operand.vmem [shape: f32[2,32,4], index: 4, kind: output, shape index: {}]
  %s5 = sld [smem:[#allocation0]]
  $region26: #{convap_forward.1} parent=0
    _
  %s7 = ssub.s32 1, %s5
  %s8 = scalar_select 0, %s7, %s5
  // Predicated region
  $region2: #{convap_forward.1} parent=0 // pred_check
    _
  $region3: #{convap_forward.1} parent=0 // pred_check_branch
    %10 = sbr.rel (0) target = $region5
  $region4: #{convap_forward.1} parent=0 // pred_region
    _
  $region5: #{convap_forward.1} parent=0 // pred_fallthru
    _
  // Predicated region
  $region6: #{convap_forward.1} parent=0 // pred_check
    _
  $region7: #{convap_forward.1} parent=0 // pred_check_branch
    %12 = sbr.rel (0) target = $region9
  $region8: #{convap_forward.1} parent=0 // pred_region
    _
  $region9: #{convap_forward.1} parent=0 // pred_fallthru
    _
  // Predicated region
  $region10: #{convap_forward.1} parent=0 // pred_check
    _
  $region11: #{convap_forward.1} parent=0 // pred_check_branch
    %14 = sbr.rel (0) target = $region13
  $region12: #{convap_forward.1} parent=0 // pred_region
    _
  $region13: #{convap_forward.1} parent=0 // pred_fallthru
    _
  // Predicated region
  $region14: #{convap_forward.1} parent=0 // pred_check
    _
  $region15: #{convap_forward.1} parent=0 // pred_check_branch
    %16 = sbr.rel (0) target = $region17
  $region16: #{convap_forward.1} parent=0 // pred_region
    _
  $region17: #{convap_forward.1} parent=0 // pred_fallthru
    _
  %v18 = vld [vmem:[%s1] sm:$0xf]
  %v19 = vld [vmem:[%s1 + $0x4] sm:$0xf]
  %v20 = vld [vmem:[%s1 + $0x8] sm:$0xf]
  %v21 = vld [vmem:[%s1 + $0xc] sm:$0xf]
  %v22 = vld [vmem:[%s1 + $0x10] sm:$0xf]
  %v23 = vld [vmem:[%s1 + $0x14] sm:$0xf]
  %v24 = vld [vmem:[%s1 + $0x18] sm:$0xf]
  %v25 = vld [vmem:[%s1 + $0x1c] sm:$0xf]
  %v26 = vld [vmem:[%s1 + $0x20] sm:$0xf]
  %v27 = vld [vmem:[%s1 + $0x24] sm:$0xf]
  %v28 = vld [vmem:[%s1 + $0x28] sm:$0xf]
  %v29 = vld [vmem:[%s1 + $0x2c] sm:$0xf]
  %v30 = vld [vmem:[%s1 + $0x30] sm:$0xf]
  %v31 = vld [vmem:[%s1 + $0x34] sm:$0xf]
  %v32 = vld [vmem:[%s1 + $0x38] sm:$0xf]
  %v33 = vld [vmem:[%s1 + $0x3c] sm:$0xf]
  %v34 = vld [vmem:[%s1 + $0x40] sm:$0xf]
  %v35 = vld [vmem:[%s1 + $0x44] sm:$0xf]
  %v36 = vld [vmem:[%s1 + $0x48] sm:$0xf]
  %v37 = vld [vmem:[%s1 + $0x4c] sm:$0xf]
  %v38 = vld [vmem:[%s1 + $0x50] sm:$0xf]
  %v39 = vld [vmem:[%s1 + $0x54] sm:$0xf]
  %v40 = vld [vmem:[%s1 + $0x58] sm:$0xf]
  %v41 = vld [vmem:[%s1 + $0x5c] sm:$0xf]
  %v42 = vld [vmem:[%s1 + $0x60] sm:$0xf]
  %v43 = vld [vmem:[%s1 + $0x64] sm:$0xf]
  %v44 = vld [vmem:[%s1 + $0x68] sm:$0xf]
  %v45 = vld [vmem:[%s1 + $0x6c] sm:$0xf]
  %v46 = vld [vmem:[%s1 + $0x70] sm:$0xf]
  %v47 = vld [vmem:[%s1 + $0x74] sm:$0xf]
  %v48 = vld [vmem:[%s1 + $0x78] sm:$0xf]
  %v49 = vld [vmem:[%s1 + $0x7c] sm:$0xf]
  %v50 = vld [vmem:[%s2] sm:$0xf]
  %v51 = vld [vmem:[%s2 + $0x4] sm:$0xf]
  %v52 = vld [vmem:[%s2 + $0x8] sm:$0xf]
  %v53 = vld [vmem:[%s2 + $0xc] sm:$0xf]
  %v54 = vld [vmem:[%s3] sm:$0xff]
  %v55 = vld [vmem:[%s3 + $0x8] sm:$0xff]
  %v56 = vld [vmem:[%s3 + $0x10] sm:$0xff]
  %v57 = vld [vmem:[%s3 + $0x18] sm:$0xff]
  %v58 = vld [vmem:[%s0] sm:$0xff]
  %v60 = vunpack.c.l.b16 %v58
  %v61 = vunpack.c.h.b16 %v58
  %v62 = vpack.c.b16 %v60, %v60
  %v63 = vpack.c.b16 %v61, %v61
  %v98 = vunpack.c.l.b16 %v18
  %v99 = vunpack.c.l.b16 %v19
  %v100 = vunpack.c.l.b16 %v20
  %v101 = vunpack.c.l.b16 %v21
  %v102 = vunpack.c.l.b16 %v22
  %v103 = vunpack.c.l.b16 %v23
  %v104 = vunpack.c.l.b16 %v24
  %v105 = vunpack.c.l.b16 %v25
  %v106 = vunpack.c.l.b16 %v26
  %v107 = vunpack.c.l.b16 %v27
  %v108 = vunpack.c.l.b16 %v28
  %v109 = vunpack.c.l.b16 %v29
  %v110 = vunpack.c.l.b16 %v30
  %v111 = vunpack.c.l.b16 %v31
  %v112 = vunpack.c.l.b16 %v32
  %v113 = vunpack.c.l.b16 %v33
  %v114 = vunpack.c.l.b16 %v34
  %v115 = vunpack.c.l.b16 %v35
  %v116 = vunpack.c.l.b16 %v36
  %v117 = vunpack.c.l.b16 %v37
  %v118 = vunpack.c.l.b16 %v38
  %v119 = vunpack.c.l.b16 %v39
  %v120 = vunpack.c.l.b16 %v40
  %v121 = vunpack.c.l.b16 %v41
  %v122 = vunpack.c.l.b16 %v42
  %v123 = vunpack.c.l.b16 %v43
  %v124 = vunpack.c.l.b16 %v44
  %v125 = vunpack.c.l.b16 %v45
  %v126 = vunpack.c.l.b16 %v46
  %v127 = vunpack.c.l.b16 %v47
  %v128 = vunpack.c.l.b16 %v48
  %v129 = vunpack.c.l.b16 %v49
  %v130 = vpack.c.b16 %v99, %v98
  %v131 = vpack.c.b16 %v101, %v100
  %v132 = vpack.c.b16 %v103, %v102
  %v133 = vpack.c.b16 %v105, %v104
  %v134 = vpack.c.b16 %v107, %v106
  %v135 = vpack.c.b16 %v109, %v108
  %v136 = vpack.c.b16 %v111, %v110
  %v137 = vpack.c.b16 %v113, %v112
  %v138 = vpack.c.b16 %v115, %v114
  %v139 = vpack.c.b16 %v117, %v116
  %v140 = vpack.c.b16 %v119, %v118
  %v141 = vpack.c.b16 %v121, %v120
  %v142 = vpack.c.b16 %v123, %v122
  %v143 = vpack.c.b16 %v125, %v124
  %v144 = vpack.c.b16 %v127, %v126
  %v145 = vpack.c.b16 %v129, %v128
  %162 = vmatprep.subr.bf16.mxu0 0
  %163 = vmatpush1.bf16.msra.mxu0 %v130
  %164 = vmatprep.subr.bf16.mxu0 0
  %165 = vmatpush1.bf16.msra.mxu0 %v131
  %166 = vmatprep.subr.bf16.mxu0 0
  %167 = vmatpush1.bf16.msra.mxu0 %v132
  %168 = vmatprep.subr.bf16.mxu0 0
  %169 = vmatpush1.bf16.msra.mxu0 %v133
  %170 = vmatprep.subr.bf16.mxu0 0
  %171 = vmatpush1.bf16.msra.mxu0 %v134
  %172 = vmatprep.subr.bf16.mxu0 0
  %173 = vmatpush1.bf16.msra.mxu0 %v135
  %174 = vmatprep.subr.bf16.mxu0 0
  %175 = vmatpush1.bf16.msra.mxu0 %v136
  %176 = vmatprep.subr.bf16.mxu0 0
  %177 = vmatpush1.bf16.msra.mxu0 %v137
  %178 = vmatprep.subr.bf16.mxu0 0
  %179 = vmatpush1.bf16.msra.mxu0 %v138
  %180 = vmatprep.subr.bf16.mxu0 0
  %181 = vmatpush1.bf16.msra.mxu0 %v139
  %182 = vmatprep.subr.bf16.mxu0 0
  %183 = vmatpush1.bf16.msra.mxu0 %v140
  %184 = vmatprep.subr.bf16.mxu0 0
  %185 = vmatpush1.bf16.msra.mxu0 %v141
  %186 = vmatprep.subr.bf16.mxu0 0
  %187 = vmatpush1.bf16.msra.mxu0 %v142
  %188 = vmatprep.subr.bf16.mxu0 0
  %189 = vmatpush1.bf16.msra.mxu0 %v143
  %190 = vmatprep.subr.bf16.mxu0 0
  %191 = vmatpush1.bf16.msra.mxu0 %v144
  %192 = vmatprep.subr.bf16.mxu0 0
  %193 = vmatpush1.bf16.msra.mxu0 %v145
  %194 = vmatprep.mubr.bf16.mxu0 %v63
  %195 = vmatmul.mubr.bf16.gmra.mrb[0].mxu0 %v62
  %v196 = vpop.f32.mrb[0].mxu0
  %v197 = vadd.f32 0.0, %v196
  %v198 = vpop.f32.mrb[0].mxu0
  %v199 = vpop.f32.mrb[0].mxu0
  %v200 = vpop.f32.mrb[0].mxu0
  %201 = vdwg.mxu0
  %v202 = vpack.c.bf16 %v197, %v197
  %204 = vset.pattern.permute.xlu0 0
  %205 = vperm.xlu0 %204, %v54
  %v206 = vpop.permute.xlu0 %205
  %209 = vset.pattern.permute.xlu0 0
  %210 = vperm.xlu0 %209, %v55
  %v211 = vpop.permute.xlu0 %210
  %214 = vset.pattern.permute.xlu0 0
  %215 = vperm.xlu0 %214, %v56
  %v216 = vpop.permute.xlu0 %215
  %219 = vset.pattern.permute.xlu0 0
  %220 = vperm.xlu0 %219, %v57
  %v221 = vpop.permute.xlu0 %220
  %v227 = vunpack.c.l.b16 %v50
  %v228 = vunpack.c.l.b16 %v51
  %v229 = vunpack.c.l.b16 %v52
  %v230 = vunpack.c.l.b16 %v53
  %v231 = vpack.c.b16 %v228, %v227
  %v232 = vpack.c.b16 %v230, %v229
  %vm233 = vcmask 64512
  %v235 = vsel %vm233, %v231, 0
  %v238 = vsel %vm233, %v232, 0
  %vm240 = vcmask 1043456
  %v242 = vsel %vm240, %v202, 0
  %244 = vmatprep.subr.bf16.mxu0 0
  %245 = vmatpush1.bf16.msra.mxu0 %v242
  %246 = vmatprep.subr.bf16.mxu0 0
  %247 = vmatpush1.bf16.msra.mxu0 0
  %248 = vmatprep.subr.bf16.mxu0 0
  %249 = vmatpush1.bf16.msra.mxu0 0
  %250 = vmatprep.subr.bf16.mxu0 0
  %251 = vmatpush1.bf16.msra.mxu0 0
  %252 = vmatprep.subr.bf16.mxu0 0
  %253 = vmatpush1.bf16.msra.mxu0 0
  %254 = vmatprep.subr.bf16.mxu0 0
  %255 = vmatpush1.bf16.msra.mxu0 0
  %256 = vmatprep.subr.bf16.mxu0 0
  %257 = vmatpush1.bf16.msra.mxu0 0
  %258 = vmatprep.subr.bf16.mxu0 0
  %259 = vmatpush1.bf16.msra.mxu0 0
  %260 = vmatprep.subr.bf16.mxu0 0
  %261 = vmatpush1.bf16.msra.mxu0 0
  %262 = vmatprep.subr.bf16.mxu0 0
  %263 = vmatpush1.bf16.msra.mxu0 0
  %264 = vmatprep.subr.bf16.mxu0 0
  %265 = vmatpush1.bf16.msra.mxu0 0
  %266 = vmatprep.subr.bf16.mxu0 0
  %267 = vmatpush1.bf16.msra.mxu0 0
  %268 = vmatprep.subr.bf16.mxu0 0
  %269 = vmatpush1.bf16.msra.mxu0 0
  %270 = vmatprep.subr.bf16.mxu0 0
  %271 = vmatpush1.bf16.msra.mxu0 0
  %272 = vmatprep.subr.bf16.mxu0 0
  %273 = vmatpush1.bf16.msra.mxu0 0
  %274 = vmatprep.subr.bf16.mxu0 0
  %275 = vmatpush1.bf16.msra.mxu0 0
  %276 = vmatprep.mubr.bf16.mxu0 0
  %277 = vmatmul.mubr.bf16.gmra.mrb[0].mxu0 %v235
  %v278 = vpop.f32.mrb[0].mxu0
  %v279 = vadd.f32 %v206, %v278
  %v280 = vpop.f32.mrb[0].mxu0
  %v281 = vpop.f32.mrb[0].mxu0
  %v282 = vadd.f32 %v211, %v281
  %v283 = vpop.f32.mrb[0].mxu0
  %284 = vmatprep.mubr.bf16.mxu0 0
  %285 = vmatmul.mubr.bf16.gmra.mrb[0].mxu0 %v238
  %v286 = vpop.f32.mrb[0].mxu0
  %v287 = vadd.f32 %v216, %v286
  %v288 = vpop.f32.mrb[0].mxu0
  %v289 = vpop.f32.mrb[0].mxu0
  %v290 = vadd.f32 %v221, %v289
  %v291 = vpop.f32.mrb[0].mxu0
  %292 = vdwg.mxu0
  %v293 = vmul.f32 %v279, %v279
  %v294 = vmul.f32 %v282, %v282
  %v295 = vmul.f32 %v287, %v287
  %v296 = vmul.f32 %v290, %v290
  %vm297 = vcmask 31744
  %v298 = vsel %vm297, %v293, 0.0
  %v299 = vsel %vm297, %v294, 0.0
  %v300 = vadd.f32 %v298, %v299
  %v301 = vsel %vm297, %v295, 0.0
  %v302 = vadd.f32 %v300, %v301
  %v303 = vsel %vm297, %v296, 0.0
  %v304 = vadd.f32 %v302, %v303
  %305 = vadd.xlane.f32.xlu0 %v304
  %v306 = vpop.xlane.xlu0 %305
  %v307 = vrot.slane %v306, 4
  %v308 = vadd.f32 %v306, %v307
  %v309 = vrot.slane %v308, 2
  %v310 = vadd.f32 %v308, %v309
  %v311 = vrot.slane %v310, 1
  %v312 = vadd.f32 %v310, %v311
  %s313 = vtos %v312
  %v314 = vstv %s313
  %v315 = vrsqrt.pop %v314
  %v316 = vmul.f32 %v314, %v315
  %vm317 = vcmp.eq.f32.partialorder %v314, inf
  %v318 = vsel %vm317, %v314, %v316
  %vm319 = vcmp.eq.f32.partialorder %v314, 0.0
  %v320 = vand.u32 %v314, 2147483648
  %v321 = vsel %vm319, %v320, %v318
  %s322 = vtos %v321
  %s323 = smax.f32 %s322, 1e-12
  %v324 = vstv %s323
  %v325 = vrcp.pop %v324
  %s326 = vtos %v325
  %v327 = vstv %s326
  %v328 = vmul.f32 %v279, %v327
  %v329 = vmul.f32 %v282, %v327
  %v330 = vmul.f32 %v287, %v327
  %v331 = vmul.f32 %v290, %v327
  %332 = vst.msk [vmem:[%s4] sm:$0xff] %vm297, %v328
  %333 = vst.msk [vmem:[%s4 + $0x8] sm:$0xff] %vm297, %v329
  %334 = vst.msk [vmem:[%s4 + $0x10] sm:$0xff] %vm297, %v330
  %335 = vst.msk [vmem:[%s4 + $0x18] sm:$0xff] %vm297, %v331
  %s336 = scalar_lea.vmem %s0, 8
  %v337 = vld [vmem:[%s336] sm:$0xff]
  %v339 = vunpack.c.l.b16 %v337
  %v340 = vunpack.c.h.b16 %v337
  %v341 = vpack.c.b16 %v339, %v339
  %v342 = vpack.c.b16 %v340, %v340
  %345 = vmatprep.subr.bf16.mxu0 0
  %346 = vmatpush1.bf16.msra.mxu0 %v130
  %347 = vmatprep.subr.bf16.mxu0 0
  %348 = vmatpush1.bf16.msra.mxu0 %v131
  %349 = vmatprep.subr.bf16.mxu0 0
  %350 = vmatpush1.bf16.msra.mxu0 %v132
  %351 = vmatprep.subr.bf16.mxu0 0
  %352 = vmatpush1.bf16.msra.mxu0 %v133
  %353 = vmatprep.subr.bf16.mxu0 0
  %354 = vmatpush1.bf16.msra.mxu0 %v134
  %355 = vmatprep.subr.bf16.mxu0 0
  %356 = vmatpush1.bf16.msra.mxu0 %v135
  %357 = vmatprep.subr.bf16.mxu0 0
  %358 = vmatpush1.bf16.msra.mxu0 %v136
  %359 = vmatprep.subr.bf16.mxu0 0
  %360 = vmatpush1.bf16.msra.mxu0 %v137
  %361 = vmatprep.subr.bf16.mxu0 0
  %362 = vmatpush1.bf16.msra.mxu0 %v138
  %363 = vmatprep.subr.bf16.mxu0 0
  %364 = vmatpush1.bf16.msra.mxu0 %v139
  %365 = vmatprep.subr.bf16.mxu0 0
  %366 = vmatpush1.bf16.msra.mxu0 %v140
  %367 = vmatprep.subr.bf16.mxu0 0
  %368 = vmatpush1.bf16.msra.mxu0 %v141
  %369 = vmatprep.subr.bf16.mxu0 0
  %370 = vmatpush1.bf16.msra.mxu0 %v142
  %371 = vmatprep.subr.bf16.mxu0 0
  %372 = vmatpush1.bf16.msra.mxu0 %v143
  %373 = vmatprep.subr.bf16.mxu0 0
  %374 = vmatpush1.bf16.msra.mxu0 %v144
  %375 = vmatprep.subr.bf16.mxu0 0
  %376 = vmatpush1.bf16.msra.mxu0 %v145
  %377 = vmatprep.mubr.bf16.mxu0 %v342
  %378 = vmatmul.mubr.bf16.gmra.mrb[0].mxu0 %v341
  %v379 = vpop.f32.mrb[0].mxu0
  %v380 = vadd.f32 0.0, %v379
  %v381 = vpop.f32.mrb[0].mxu0
  %v382 = vpop.f32.mrb[0].mxu0
  %v383 = vpop.f32.mrb[0].mxu0
  %384 = vdwg.mxu0
  %v385 = vpack.c.bf16 %v380, %v380
  %v387 = vsel %vm240, %v385, 0
  %389 = vmatprep.subr.bf16.mxu0 0
  %390 = vmatpush1.bf16.msra.mxu0 %v387
  %391 = vmatprep.subr.bf16.mxu0 0
  %392 = vmatpush1.bf16.msra.mxu0 0
  %393 = vmatprep.subr.bf16.mxu0 0
  %394 = vmatpush1.bf16.msra.mxu0 0
  %395 = vmatprep.subr.bf16.mxu0 0
  %396 = vmatpush1.bf16.msra.mxu0 0
  %397 = vmatprep.subr.bf16.mxu0 0
  %398 = vmatpush1.bf16.msra.mxu0 0
  %399 = vmatprep.subr.bf16.mxu0 0
  %400 = vmatpush1.bf16.msra.mxu0 0
  %401 = vmatprep.subr.bf16.mxu0 0
  %402 = vmatpush1.bf16.msra.mxu0 0
  %403 = vmatprep.subr.bf16.mxu0 0
  %404 = vmatpush1.bf16.msra.mxu0 0
  %405 = vmatprep.subr.bf16.mxu0 0
  %406 = vmatpush1.bf16.msra.mxu0 0
  %407 = vmatprep.subr.bf16.mxu0 0
  %408 = vmatpush1.bf16.msra.mxu0 0
  %409 = vmatprep.subr.bf16.mxu0 0
  %410 = vmatpush1.bf16.msra.mxu0 0
  %411 = vmatprep.subr.bf16.mxu0 0
  %412 = vmatpush1.bf16.msra.mxu0 0
  %413 = vmatprep.subr.bf16.mxu0 0
  %414 = vmatpush1.bf16.msra.mxu0 0
  %415 = vmatprep.subr.bf16.mxu0 0
  %416 = vmatpush1.bf16.msra.mxu0 0
  %417 = vmatprep.subr.bf16.mxu0 0
  %418 = vmatpush1.bf16.msra.mxu0 0
  %419 = vmatprep.subr.bf16.mxu0 0
  %420 = vmatpush1.bf16.msra.mxu0 0
  %421 = vmatprep.mubr.bf16.mxu0 0
  %422 = vmatmul.mubr.bf16.gmra.mrb[0].mxu0 %v235
  %v423 = vpop.f32.mrb[0].mxu0
  %v424 = vadd.f32 %v206, %v423
  %v425 = vpop.f32.mrb[0].mxu0
  %v426 = vpop.f32.mrb[0].mxu0
  %v427 = vadd.f32 %v211, %v426
  %v428 = vpop.f32.mrb[0].mxu0
  %429 = vmatprep.mubr.bf16.mxu0 0
  %430 = vmatmul.mubr.bf16.gmra.mrb[0].mxu0 %v238
  %v431 = vpop.f32.mrb[0].mxu0
  %v432 = vadd.f32 %v216, %v431
  %v433 = vpop.f32.mrb[0].mxu0
  %v434 = vpop.f32.mrb[0].mxu0
  %v435 = vadd.f32 %v221, %v434
  %v436 = vpop.f32.mrb[0].mxu0
  %437 = vdwg.mxu0
  %v438 = vmul.f32 %v424, %v424
  %v439 = vmul.f32 %v427, %v427
  %v440 = vmul.f32 %v432, %v432
  %v441 = vmul.f32 %v435, %v435
  %v442 = vsel %vm297, %v438, 0.0
  %v443 = vsel %vm297, %v439, 0.0
  %v444 = vadd.f32 %v442, %v443
  %v445 = vsel %vm297, %v440, 0.0
  %v446 = vadd.f32 %v444, %v445
  %v447 = vsel %vm297, %v441, 0.0
  %v448 = vadd.f32 %v446, %v447
  %449 = vadd.xlane.f32.xlu0 %v448
  %v450 = vpop.xlane.xlu0 %449
  %v451 = vrot.slane %v450, 4
  %v452 = vadd.f32 %v450, %v451
  %v453 = vrot.slane %v452, 2
  %v454 = vadd.f32 %v452, %v453
  %v455 = vrot.slane %v454, 1
  %v456 = vadd.f32 %v454, %v455
  %s457 = vtos %v456
  %v458 = vstv %s457
  %v459 = vrsqrt.pop %v458
  %v460 = vmul.f32 %v458, %v459
  %vm461 = vcmp.eq.f32.partialorder %v458, inf
  %v462 = vsel %vm461, %v458, %v460
  %vm463 = vcmp.eq.f32.partialorder %v458, 0.0
  %v464 = vand.u32 %v458, 2147483648
  %v465 = vsel %vm463, %v464, %v462
  %s466 = vtos %v465
  %s467 = smax.f32 %s466, 1e-12
  %v468 = vstv %s467
  %v469 = vrcp.pop %v468
  %s470 = vtos %v469
  %v471 = vstv %s470
  %v472 = vmul.f32 %v424, %v471
  %v473 = vmul.f32 %v427, %v471
  %v474 = vmul.f32 %v432, %v471
  %v475 = vmul.f32 %v435, %v471
  %s476 = scalar_lea.vmem %s4, 32
  %477 = vst.msk [vmem:[%s476] sm:$0xff] %vm297, %v472
  %478 = vst.msk [vmem:[%s476 + $0x8] sm:$0xff] %vm297, %v473
  %479 = vst.msk [vmem:[%s476 + $0x10] sm:$0xff] %vm297, %v474
  %480 = vst.msk [vmem:[%s476 + $0x18] sm:$0xff] %vm297, %v475
  // Predicated region
  $region18: #{convap_forward.1} parent=0 // pred_check
    _
  $region19: #{convap_forward.1} parent=0 // pred_check_branch
    %482 = sbr.rel (0) target = $region21
  $region20: #{convap_forward.1} parent=0 // pred_region
    _
  $region21: #{convap_forward.1} parent=0 // pred_fallthru
    _
  // Predicated region
  $region22: #{convap_forward.1} parent=0 // pred_check
    _
  $region23: #{convap_forward.1} parent=0 // pred_check_branch
    %484 = sbr.rel (0) target = $region25
  $region24: #{convap_forward.1} parent=0 // pred_region
    _
  $region25: #{convap_forward.1} parent=0 // pred_fallthru
    _

</llo_original>
